<compile_context>
chip_gen: v7x
topology: tpu7x:2x2x1
jax: 0.10.0
libtpu: 0.0.40
codegen_flags: <defaults>
</compile_context>

<pallas_src>
import numpy as np
import jax
import jax.numpy as jnp
from jax.experimental import pallas as pl
from jax.experimental.pallas import tpu as pltpu


LANE = 128       # TPU vreg lane width
TM_MAX = 512     # max row tile; sweep {256, 512, 1024} for production M
_TM_CANDIDATES = (16, 32, 64, 128, 256, 512, 1024)


def _round_up(x, m):
    return ((x + m - 1) // m) * m


# ----------------------------------------------------------------------------
# Deterministic parameter construction (librosa-style slaney mel filterbank,
# periodic hann window) -- plain numpy, no file IO.
# ----------------------------------------------------------------------------
def _hz_to_mel(f):
    f = np.asarray(f, dtype=np.float64)
    f_sp = 200.0 / 3
    mels = f / f_sp
    min_log_hz = 1000.0
    min_log_mel = min_log_hz / f_sp
    logstep = np.log(6.4) / 27.0
    mels = np.where(f >= min_log_hz,
                    min_log_mel + np.log(np.maximum(f, min_log_hz) / min_log_hz) / logstep,
                    mels)
    return mels


def _mel_to_hz(m):
    m = np.asarray(m, dtype=np.float64)
    f_sp = 200.0 / 3
    freqs = f_sp * m
    min_log_hz = 1000.0
    min_log_mel = min_log_hz / f_sp
    logstep = np.log(6.4) / 27.0
    freqs = np.where(m >= min_log_mel,
                     min_log_hz * np.exp(logstep * (m - min_log_mel)),
                     freqs)
    return freqs


def mel_filterbank(sr, n_fft, n_mels, fmin=0.0, fmax=None):
    if fmax is None:
        fmax = sr / 2.0
    n_freq = n_fft // 2 + 1
    fftfreqs = np.linspace(0.0, sr / 2.0, n_freq)
    mel_pts = np.linspace(_hz_to_mel(fmin), _hz_to_mel(fmax), n_mels + 2)
    mel_f = _mel_to_hz(mel_pts)
    fdiff = np.diff(mel_f)
    ramps = mel_f[:, None] - fftfreqs[None, :]
    lower = -ramps[:-2] / fdiff[:-1, None]
    upper = ramps[2:] / fdiff[1:, None]
    weights = np.maximum(0.0, np.minimum(lower, upper))
    enorm = 2.0 / (mel_f[2:n_mels + 2] - mel_f[:n_mels])
    weights = weights * enorm[:, None]
    return weights.astype(np.float32)  # (n_mels, n_freq)


def hann_window(win_length):
    # torch.hann_window default is periodic
    n = np.arange(win_length, dtype=np.float64)
    return (0.5 - 0.5 * np.cos(2.0 * np.pi * n / win_length)).astype(np.float32)


# ----------------------------------------------------------------------------
# Pallas kernel: two half-width DFT matmuls (re / im), power spectrum,
# mel matmul, log10/clamp.  All matmul operands bf16, f32 accumulation.
#   frames_ref : (tm, n_fft)            bf16
#   wcos_ref   : (n_fft, n_freq_pad)    bf16   windowed cos basis, zero-padded
#   wsin_ref   : (n_fft, n_freq_pad)    bf16   windowed sin basis, zero-padded
#   melT_ref   : (n_freq_pad, n_mel_pad) bf16  zero-padded rows / columns
#   out_ref    : (tm, n_mel_pad)        f32
# ----------------------------------------------------------------------------
def _audio2mel_kernel(frames_ref, wcos_ref, wsin_ref, melT_ref, out_ref):
    f = frames_ref[...]                                                  # (tm, n_fft) bf16
    re = jnp.dot(f, wcos_ref[...], preferred_element_type=jnp.float32)   # (tm, Fp) f32
    im = jnp.dot(f, wsin_ref[...], preferred_element_type=jnp.float32)   # (tm, Fp) f32
    power = re * re + im * im                                            # (tm, Fp) f32
    mel = jnp.dot(power.astype(melT_ref.dtype), melT_ref[...],
                  preferred_element_type=jnp.float32)                    # (tm, Mp) f32
    out_ref[...] = jnp.log10(jnp.maximum(mel, 1e-5))


def _pallas_call_audio2mel(frames, wcos, wsin, melT, tm, *, single_buffer_weights):
    M, n_fft = frames.shape
    n_freq_pad = wcos.shape[1]
    n_mel_pad = melT.shape[1]
    assert M % tm == 0
    assert wsin.shape == (n_fft, n_freq_pad)
    assert melT.shape[0] == n_freq_pad

    if single_buffer_weights:
        # Constant-index blocks are DMA'd once; single-buffering frees VMEM
        # headroom (matters for v5e's 16 MiB default scoped limit / raising tm).
        def wspec(shape):
            return pl.BlockSpec(shape, lambda i: (0, 0), pipeline_mode=pl.Buffered(1))
    else:
        def wspec(shape):
            return pl.BlockSpec(shape, lambda i: (0, 0))

    def nbytes(a):
        return int(np.prod(a.shape)) * a.dtype.itemsize

    flops = 2 * M * n_fft * (2 * n_freq_pad) + 2 * M * n_freq_pad * n_mel_pad
    cost = pl.CostEstimate(
        flops=flops,
        transcendentals=M * n_mel_pad,  # log10
        bytes_accessed=(nbytes(frames) + nbytes(wcos) + nbytes(wsin)
                        + nbytes(melT) + M * n_mel_pad * 4),
    )

    return pl.pallas_call(
        _audio2mel_kernel,
        out_shape=jax.ShapeDtypeStruct((M, n_mel_pad), jnp.float32),
        grid_spec=pltpu.PrefetchScalarGridSpec(
            num_scalar_prefetch=0,
            grid=(M // tm,),
            in_specs=[
                pl.BlockSpec((tm, n_fft), lambda i: (i, 0)),
                wspec((n_fft, n_freq_pad)),
                wspec((n_fft, n_freq_pad)),
                wspec((n_freq_pad, n_mel_pad)),
            ],
            out_specs=pl.BlockSpec((tm, n_mel_pad), lambda i: (i, 0)),
        ),
        compiler_params=pltpu.CompilerParams(
            # each grid step writes a distinct output tile -> safe to shard
            # across v7x's 2 TensorCores; neutral on v5e/v6e.
            dimension_semantics=("parallel",),
            vmem_limit_bytes=48 * 1024 * 1024,
        ),
        cost_estimate=cost,
    )(frames, wcos, wsin, melT)


def _run_pallas(frames, wcos, wsin, melT, tm):
    try:
        return _pallas_call_audio2mel(frames, wcos, wsin, melT, tm,
                                      single_buffer_weights=True)
    except Exception:
        # Conservative fallback if this Pallas build rejects Buffered(1) on a
        # constant-index BlockSpec (numerics are identical either way).
        return _pallas_call_audio2mel(frames, wcos, wsin, melT, tm,
                                      single_buffer_weights=False)


def _choose_tm(m, tm_max=TM_MAX):
    m16 = _round_up(max(int(m), 1), 16)
    best, best_key = 16, None
    for tm in _TM_CANDIDATES:
        if tm > tm_max or tm > m16:
            break
        steps = -(-m16 // tm)
        # v7x shards the single "parallel" axis across 2 TensorCores: prefer an
        # even grid with >= 2 steps; then the tallest tile (amortizes the
        # ~0.35us/step overhead and keeps the 256-tall MXU fed).
        key = (steps >= 2, steps >= 2 and steps % 2 == 0, tm)
        if best_key is None or key > best_key:
            best, best_key = tm, key
    return best


# ----------------------------------------------------------------------------
# Audio2Mel forward (pad/frame glue in JAX, hot path in one Pallas kernel)
# ----------------------------------------------------------------------------
class Audio2Mel:
    def __init__(self, n_fft=1024, hop_length=256, win_length=1024,
                 sampling_rate=16000, n_mel_channels=80,
                 mel_fmin=0.0, mel_fmax=None):
        assert win_length == n_fft  # matches the module's default usage
        self.n_fft = n_fft
        self.hop_length = hop_length
        self.win_length = win_length
        self.n_mel_channels = n_mel_channels

        n_freq = n_fft // 2 + 1
        window = hann_window(win_length)                                 # (n_fft,)
        mel_basis = mel_filterbank(sampling_rate, n_fft, n_mel_channels,
                                   mel_fmin, mel_fmax)                   # (n_mel, n_freq)

        # DC / Nyquist bins carry (numerically) zero weight in the slaney
        # filterbank for fmin=0, fmax<=sr/2; dropping them is exact for the mel
        # output and shrinks n_freq_pad (513 -> 512 for n_fft=1024).  Guarded:
        # keep all bins if a custom fmin/fmax makes the edge columns nonzero.
        col_max = float(np.abs(mel_basis).max())
        drop_edges = (n_freq > 2 and col_max > 0.0
                      and float(np.abs(mel_basis[:, 0]).max()) <= 1e-6 * col_max
                      and float(np.abs(mel_basis[:, -1]).max()) <= 1e-6 * col_max)
        k_lo, k_hi = (1, n_freq - 1) if drop_edges else (0, n_freq)
        n_keep = k_hi - k_lo

        n_freq_pad = _round_up(n_keep, LANE)          # e.g. 511 -> 512
        n_mel_pad = _round_up(n_mel_channels, LANE)   # e.g. 80  -> 128
        self.n_freq_pad = n_freq_pad
        self.n_mel_pad = n_mel_pad

        # Windowed real-DFT bases (kept bins only), zero-padded on the freq
        # axis to a lane multiple.  Stored in bf16 for native-MXU throughput.
        n = np.arange(n_fft, dtype=np.float64)[:, None]
        k = np.arange(k_lo, k_hi, dtype=np.float64)[None, :]
        ang = 2.0 * np.pi * n * k / n_fft
        cosw = np.zeros((n_fft, n_freq_pad), dtype=np.float32)
        sinw = np.zeros((n_fft, n_freq_pad), dtype=np.float32)
        cosw[:, :n_keep] = (np.cos(ang) * window[:, None]).astype(np.float32)
        sinw[:, :n_keep] = (np.sin(ang) * window[:, None]).astype(np.float32)
        self.wcos = jnp.asarray(cosw, dtype=jnp.bfloat16)                # (n_fft, Fp)
        self.wsin = jnp.asarray(sinw, dtype=jnp.bfloat16)                # (n_fft, Fp)

        # mel basis transposed, zero-padded rows (freq) and columns (mel).
        melT = np.zeros((n_freq_pad, n_mel_pad), dtype=np.float32)
        melT[:n_keep, :n_mel_channels] = mel_basis[:, k_lo:k_hi].T
        self.melT = jnp.asarray(melT, dtype=jnp.bfloat16)                # (Fp, Mp)

    def __call__(self, audioin):
        # audioin: (B, 1, T) float32
        B = audioin.shape[0]
        p = (self.n_fft - self.hop_length) // 2
        audio = jnp.pad(audioin, ((0, 0), (0, 0), (p, p)), mode="reflect")
        audio = jnp.squeeze(audio, axis=1).astype(jnp.bfloat16)          # (B, T + 2p)
        T_pad = audio.shape[-1]
        n_frames = (T_pad - self.n_fft) // self.hop_length + 1

        # Frame extraction (gather glue), materialized in bf16 to halve HBM
        # traffic.  TODO(synk): replace with in-kernel slab DMA on v5e (see top).
        idx = (np.arange(n_frames)[:, None] * self.hop_length
               + np.arange(self.n_fft)[None, :])                         # (F, n_fft)
        frames = audio[:, idx]                                           # (B, F, n_fft)
        M = B * n_frames
        frames = frames.reshape(M, self.n_fft)

        tm = _choose_tm(M)
        M_pad = _round_up(M, tm)
        if M_pad != M:
            # padded rows are zeros -> log10(1e-5) rows, sliced off below.
            frames = jnp.pad(frames, ((0, M_pad - M), (0, 0)))

        out = _run_pallas(frames, self.wcos, self.wsin, self.melT, tm)   # (M_pad, Mp)
        out = out[:M, :self.n_mel_channels].reshape(B, n_frames, self.n_mel_channels)
        return jnp.transpose(out, (0, 2, 1))                             # (B, n_mel, F)


if __name__ == "__main__":
    # Small shapes consistent with the module: n_fft=128, hop=32, 16 mel bins.
    B, T = 2, 256
    key = jax.random.PRNGKey(0)
    audio = jax.random.normal(key, (B, 1, T), dtype=jnp.float32)

    a2m = Audio2Mel(n_fft=128, hop_length=32, win_length=128,
                    sampling_rate=16000, n_mel_channels=16,
                    mel_fmin=0.0, mel_fmax=None)
    log_mel = a2m(audio)
    jax.block_until_ready(log_mel)
    # expected output shape: (B, n_mel, n_frames) = (2, 16, 8)
    assert log_mel.shape == (2, 16, 8), log_mel.shape
    assert bool(jnp.all(jnp.isfinite(log_mel)))
    print("KERNEL_OK")
</pallas_src>

<mosaic_0001>
module attributes {stable_mosaic.version = 11 : i64} {
  func.func @_audio2mel_kernel(%arg0: i32, %arg1: memref<16x128xbf16, #tpu.memory_space<vmem>>, %arg2: memref<128x128xbf16, #tpu.memory_space<vmem>>, %arg3: memref<128x128xbf16, #tpu.memory_space<vmem>>, %arg4: memref<128x128xbf16, #tpu.memory_space<vmem>>, %arg5: memref<16x128xf32, #tpu.memory_space<vmem>>) attributes {dimension_semantics = [#tpu.dimension_semantics<parallel>], iteration_bounds = array<i64: 1>, scalar_prefetch = 0 : i64, scratch_operands = 0 : i64, tpu.core_type = #tpu.core_type<tc>, window_params = [{transform_indices = @transform_0, window_bounds = array<i64: 16, 128>}, {pipeline_mode = #tpu.pipeline_mode<synchronous>, transform_indices = @transform_1, window_bounds = array<i64: 128, 128>}, {pipeline_mode = #tpu.pipeline_mode<synchronous>, transform_indices = @transform_2, window_bounds = array<i64: 128, 128>}, {pipeline_mode = #tpu.pipeline_mode<synchronous>, transform_indices = @transform_3, window_bounds = array<i64: 128, 128>}, {transform_indices = @transform_4, window_bounds = array<i64: 16, 128>}]} {
    %c0 = arith.constant 0 : index
    %c0_0 = arith.constant 0 : index
    %0 = vector.load %arg1[%c0, %c0_0] : memref<16x128xbf16, #tpu.memory_space<vmem>>, vector<16x128xbf16>
    %c0_1 = arith.constant 0 : index
    %c0_2 = arith.constant 0 : index
    %1 = vector.load %arg2[%c0_1, %c0_2] : memref<128x128xbf16, #tpu.memory_space<vmem>>, vector<128x128xbf16>
    %cst = arith.constant dense<0.000000e+00> : vector<16x128xf32>
    %2 = tpu.matmul %0, %1, %cst {dimension_numbers = #tpu.dot_dimension_numbers<[1], [0], [0], [1], [0, 0, 1, 1], [], []>} : vector<16x128xbf16>, vector<128x128xbf16>, vector<16x128xf32> -> vector<16x128xf32>
    %c0_3 = arith.constant 0 : index
    %c0_4 = arith.constant 0 : index
    %3 = vector.load %arg3[%c0_3, %c0_4] : memref<128x128xbf16, #tpu.memory_space<vmem>>, vector<128x128xbf16>
    %cst_5 = arith.constant dense<0.000000e+00> : vector<16x128xf32>
    %4 = tpu.matmul %0, %3, %cst_5 {dimension_numbers = #tpu.dot_dimension_numbers<[1], [0], [0], [1], [0, 0, 1, 1], [], []>} : vector<16x128xbf16>, vector<128x128xbf16>, vector<16x128xf32> -> vector<16x128xf32>
    %5 = arith.mulf %2, %2 : vector<16x128xf32>
    %6 = arith.mulf %4, %4 : vector<16x128xf32>
    %7 = arith.addf %5, %6 : vector<16x128xf32>
    %8 = arith.truncf %7 : vector<16x128xf32> to vector<16x128xbf16>
    %c0_6 = arith.constant 0 : index
    %c0_7 = arith.constant 0 : index
    %9 = vector.load %arg4[%c0_6, %c0_7] : memref<128x128xbf16, #tpu.memory_space<vmem>>, vector<128x128xbf16>
    %cst_8 = arith.constant dense<0.000000e+00> : vector<16x128xf32>
    %10 = tpu.matmul %8, %9, %cst_8 {dimension_numbers = #tpu.dot_dimension_numbers<[1], [0], [0], [1], [0, 0, 1, 1], [], []>} : vector<16x128xbf16>, vector<128x128xbf16>, vector<16x128xf32> -> vector<16x128xf32>
    %cst_9 = arith.constant 9.99999974E-6 : f32
    %11 = vector.broadcast %cst_9 : f32 to vector<16x128xf32>
    %12 = arith.maximumf %10, %11 : vector<16x128xf32>
    %13 = math.log %12 : vector<16x128xf32>
    %cst_10 = arith.constant 0.434294492 : f32
    %14 = vector.broadcast %cst_10 : f32 to vector<16x128xf32>
    %15 = arith.mulf %13, %14 : vector<16x128xf32>
    %c0_11 = arith.constant 0 : index
    %c0_12 = arith.constant 0 : index
    %16 = vector.load %arg5[%c0_11, %c0_12] : memref<16x128xf32, #tpu.memory_space<vmem>>, vector<16x128xf32>
    tpu.vector_store %arg5[%c0_11, %c0_12], %15 {strides = array<i32>} : memref<16x128xf32, #tpu.memory_space<vmem>>, vector<16x128xf32>,
    return
  }
  func.func @transform_0(%arg0: i32) -> (i32, i32) {
    %c0_i32 = arith.constant 0 : i32
    %c0_i32_0 = arith.constant 0 : i32
    return %arg0, %c0_i32 : i32, i32
  }
  func.func @transform_1(%arg0: i32) -> (i32, i32) {
    %c0_i32 = arith.constant 0 : i32
    %c0_i32_0 = arith.constant 0 : i32
    %c0_i32_1 = arith.constant 0 : i32
    return %c0_i32, %c0_i32_0 : i32, i32
  }
  func.func @transform_2(%arg0: i32) -> (i32, i32) {
    %c0_i32 = arith.constant 0 : i32
    %c0_i32_0 = arith.constant 0 : i32
    %c0_i32_1 = arith.constant 0 : i32
    return %c0_i32, %c0_i32_0 : i32, i32
  }
  func.func @transform_3(%arg0: i32) -> (i32, i32) {
    %c0_i32 = arith.constant 0 : i32
    %c0_i32_0 = arith.constant 0 : i32
    %c0_i32_1 = arith.constant 0 : i32
    return %c0_i32, %c0_i32_0 : i32, i32
  }
  func.func @transform_4(%arg0: i32) -> (i32, i32) {
    %c0_i32 = arith.constant 0 : i32
    %c0_i32_0 = arith.constant 0 : i32
    return %arg0, %c0_i32 : i32, i32
  }
}

module attributes {stable_mosaic.version = 11 : i64} {
  func.func @_audio2mel_kernel(%arg0: i32, %arg1: memref<16x128xbf16, #tpu.memory_space<vmem>>, %arg2: memref<128x128xbf16, #tpu.memory_space<vmem>>, %arg3: memref<128x128xbf16, #tpu.memory_space<vmem>>, %arg4: memref<128x128xbf16, #tpu.memory_space<vmem>>, %arg5: memref<16x128xf32, #tpu.memory_space<vmem>>) attributes {dimension_semantics = [#tpu.dimension_semantics<parallel>], iteration_bounds = array<i64: 1>, scalar_prefetch = 0 : i64, scratch_operands = 0 : i64, tpu.core_type = #tpu.core_type<tc>, window_params = [{transform_indices = @transform_0, window_bounds = array<i64: 16, 128>}, {pipeline_mode = #tpu.pipeline_mode<synchronous>, transform_indices = @transform_1, window_bounds = array<i64: 128, 128>}, {pipeline_mode = #tpu.pipeline_mode<synchronous>, transform_indices = @transform_2, window_bounds = array<i64: 128, 128>}, {pipeline_mode = #tpu.pipeline_mode<synchronous>, transform_indices = @transform_3, window_bounds = array<i64: 128, 128>}, {transform_indices = @transform_4, window_bounds = array<i64: 16, 128>}]} {
    %c0 = arith.constant 0 : index
    %c0_0 = arith.constant 0 : index
    %0 = vector.load %arg1[%c0, %c0_0] : memref<16x128xbf16, #tpu.memory_space<vmem>>, vector<16x128xbf16>
    %c0_1 = arith.constant 0 : index
    %c0_2 = arith.constant 0 : index
    %1 = vector.load %arg2[%c0_1, %c0_2] : memref<128x128xbf16, #tpu.memory_space<vmem>>, vector<128x128xbf16>
    %cst = arith.constant dense<0.000000e+00> : vector<16x128xf32>
    %2 = tpu.matmul %0, %1, %cst {dimension_numbers = #tpu.dot_dimension_numbers<[1], [0], [0], [1], [0, 0, 1, 1], [], []>} : vector<16x128xbf16>, vector<128x128xbf16>, vector<16x128xf32> -> vector<16x128xf32>
    %c0_3 = arith.constant 0 : index
    %c0_4 = arith.constant 0 : index
    %3 = vector.load %arg3[%c0_3, %c0_4] : memref<128x128xbf16, #tpu.memory_space<vmem>>, vector<128x128xbf16>
    %cst_5 = arith.constant dense<0.000000e+00> : vector<16x128xf32>
    %4 = tpu.matmul %0, %3, %cst_5 {dimension_numbers = #tpu.dot_dimension_numbers<[1], [0], [0], [1], [0, 0, 1, 1], [], []>} : vector<16x128xbf16>, vector<128x128xbf16>, vector<16x128xf32> -> vector<16x128xf32>
    %5 = arith.mulf %2, %2 : vector<16x128xf32>
    %6 = arith.mulf %4, %4 : vector<16x128xf32>
    %7 = arith.addf %5, %6 : vector<16x128xf32>
    %8 = arith.truncf %7 : vector<16x128xf32> to vector<16x128xbf16>
    %c0_6 = arith.constant 0 : index
    %c0_7 = arith.constant 0 : index
    %9 = vector.load %arg4[%c0_6, %c0_7] : memref<128x128xbf16, #tpu.memory_space<vmem>>, vector<128x128xbf16>
    %cst_8 = arith.constant dense<0.000000e+00> : vector<16x128xf32>
    %10 = tpu.matmul %8, %9, %cst_8 {dimension_numbers = #tpu.dot_dimension_numbers<[1], [0], [0], [1], [0, 0, 1, 1], [], []>} : vector<16x128xbf16>, vector<128x128xbf16>, vector<16x128xf32> -> vector<16x128xf32>
    %cst_9 = arith.constant 9.99999974E-6 : f32
    %11 = vector.broadcast %cst_9 : f32 to vector<16x128xf32>
    %12 = arith.maximumf %10, %11 : vector<16x128xf32>
    %13 = math.log %12 : vector<16x128xf32>
    %cst_10 = arith.constant 0.434294492 : f32
    %14 = vector.broadcast %cst_10 : f32 to vector<16x128xf32>
    %15 = arith.mulf %13, %14 : vector<16x128xf32>
    %c0_11 = arith.constant 0 : index
    %c0_12 = arith.constant 0 : index
    %16 = vector.load %arg5[%c0_11, %c0_12] : memref<16x128xf32, #tpu.memory_space<vmem>>, vector<16x128xf32>
    tpu.vector_store %arg5[%c0_11, %c0_12], %15 {strides = array<i32>} : memref<16x128xf32, #tpu.memory_space<vmem>>, vector<16x128xf32>,
    return
  }
  func.func @transform_0(%arg0: i32) -> (i32, i32) {
    %c0_i32 = arith.constant 0 : i32
    %c0_i32_0 = arith.constant 0 : i32
    return %arg0, %c0_i32 : i32, i32
  }
  func.func @transform_1(%arg0: i32) -> (i32, i32) {
    %c0_i32 = arith.constant 0 : i32
    %c0_i32_0 = arith.constant 0 : i32
    %c0_i32_1 = arith.constant 0 : i32
    return %c0_i32, %c0_i32_0 : i32, i32
  }
  func.func @transform_2(%arg0: i32) -> (i32, i32) {
    %c0_i32 = arith.constant 0 : i32
    %c0_i32_0 = arith.constant 0 : i32
    %c0_i32_1 = arith.constant 0 : i32
    return %c0_i32, %c0_i32_0 : i32, i32
  }
  func.func @transform_3(%arg0: i32) -> (i32, i32) {
    %c0_i32 = arith.constant 0 : i32
    %c0_i32_0 = arith.constant 0 : i32
    %c0_i32_1 = arith.constant 0 : i32
    return %c0_i32, %c0_i32_0 : i32, i32
  }
  func.func @transform_4(%arg0: i32) -> (i32, i32) {
    %c0_i32 = arith.constant 0 : i32
    %c0_i32_0 = arith.constant 0 : i32
    return %arg0, %c0_i32 : i32, i32
  }
}

</mosaic_0001>

<llo_original>
// kernel: tpu_custom_call.1
$region0: #{tpu_custom_call.1}
  #allocation0 [shape = 'u32[]', space=smem, size = 0x4, offset = 0x4, fixed_abs, tag = 'smem constant byte address 0x4 - core index']
  #allocation1 [shape = 'u32[144,128]{1,0:T(1,128)}', space=vmem, size = 0x12000, scoped, tag = 'internal scratch']
  %s0 = inlined_call_operand.hbm [shape: bf16[16,128], index: 0, kind: input, shape index: {}]
  %s1 = inlined_call_operand.hbm [shape: bf16[128,128], index: 1, kind: input, shape index: {}]
  %s2 = inlined_call_operand.hbm [shape: bf16[128,128], index: 2, kind: input, shape index: {}]
  %s3 = inlined_call_operand.hbm [shape: bf16[128,128], index: 3, kind: input, shape index: {}]
  %s4 = inlined_call_operand.hbm [shape: f32[16,128], index: 4, kind: output, shape index: {}]
  %s5 = sld [smem:[#allocation0]]
  $region42: #{tpu_custom_call.1} parent=0
    _
  %s7 = ssub.s32 1, %s5
  %s8 = scalar_select 0, %s7, %s5
  $region1: #{tpu_custom_call.1} parent=0
    #allocation2 [shape = 'u8[4096]{0}', space=vmem, size = 0x1000, scoped, tag = 'input window, operand 0, single buffered']
    #allocation3 [shape = 's32[1]{0}', space=sflag, size = 0x4, scoped, tag = 'scoped memory for tpu_custom_call.1']
    #allocation4 [shape = 's32[1]{0}', space=sflag, size = 0x4, scoped, tag = 'scoped memory for tpu_custom_call.1']
    #allocation5 [shape = 'u8[32768]{0}', space=vmem, size = 0x8000, scoped, tag = 'input window, operand 1, single buffered']
    #allocation6 [shape = 's32[1]{0}', space=sflag, size = 0x4, scoped, tag = 'scoped memory for tpu_custom_call.1']
    #allocation7 [shape = 'u8[32768]{0}', space=vmem, size = 0x8000, scoped, tag = 'input window, operand 2, single buffered']
    #allocation8 [shape = 'u8[32768]{0}', space=vmem, size = 0x8000, scoped, tag = 'input window, operand 3, single buffered']
    #allocation9 [shape = 's32[1]{0}', space=sflag, size = 0x4, scoped, tag = 'scoped memory for tpu_custom_call.1']
    #allocation10 [shape = 'u8[8192]{0}', space=vmem, size = 0x2000, scoped, tag = 'output window, operand 0, single buffered']
    %9 = vsyncpa [#allocation3], 0
    %10 = vsyncpa [#allocation6], 0
    %11 = vsyncpa [#allocation9], 0
    %12 = vsyncpa [#allocation4], 0
    // Predicated region
    $region2: #{tpu_custom_call.1} parent=1 // pred_check
      _
    $region3: #{tpu_custom_call.1} parent=1 // pred_check_branch
      %14 = sbr.rel (0) target = $region5
    $region4: #{tpu_custom_call.1} parent=1 // pred_region
      %s16 = ssub.s32 128, 128
      %17 = vsyncadd [#allocation3], %s16
      %s18 = sshll.u32 [#allocation2], 4
      %s19 = int_to_ptr.vmem [resolvable:$true] %s18
      %24 = dma.hbm_to_vmem [thread:$0]  %s0, 128, %s19, [#allocation3], 64, 64, 4
    $region5: #{tpu_custom_call.1} parent=1 // pred_fallthru
      _
    // Predicated region
    $region6: #{tpu_custom_call.1} parent=1 // pred_check
      _
    $region7: #{tpu_custom_call.1} parent=1 // pred_check_branch
      %26 = sbr.rel (0) target = $region9
    $region8: #{tpu_custom_call.1} parent=1 // pred_region
      %s28 = ssub.s32 1024, 1024
      %29 = vsyncadd [#allocation6], %s28
      %s30 = sshll.u32 [#allocation5], 4
      %s31 = int_to_ptr.vmem [resolvable:$true] %s30
      %36 = dma.hbm_to_vmem [thread:$0]  %s1, 1024, %s31, [#allocation6], 64, 64, 4
    $region9: #{tpu_custom_call.1} parent=1 // pred_fallthru
      _
    // Predicated region
    $region10: #{tpu_custom_call.1} parent=1 // pred_check
      _
    $region11: #{tpu_custom_call.1} parent=1 // pred_check_branch
      %38 = sbr.rel (0) target = $region13
    $region12: #{tpu_custom_call.1} parent=1 // pred_region
      %s40 = ssub.s32 1024, 1024
      %41 = vsyncadd [#allocation6], %s40
      %s42 = sshll.u32 [#allocation7], 4
      %s43 = int_to_ptr.vmem [resolvable:$true] %s42
      %48 = dma.hbm_to_vmem [thread:$0]  %s2, 1024, %s43, [#allocation6], 64, 64, 4
    $region13: #{tpu_custom_call.1} parent=1 // pred_fallthru
      _
    // Predicated region
    $region14: #{tpu_custom_call.1} parent=1 // pred_check
      _
    $region15: #{tpu_custom_call.1} parent=1 // pred_check_branch
      %50 = sbr.rel (0) target = $region17
    $region16: #{tpu_custom_call.1} parent=1 // pred_region
      %s52 = ssub.s32 1024, 1024
      %53 = vsyncadd [#allocation9], %s52
      %s54 = sshll.u32 [#allocation8], 4
      %s55 = int_to_ptr.vmem [resolvable:$true] %s54
      %60 = dma.hbm_to_vmem [thread:$0]  %s3, 1024, %s55, [#allocation9], 64, 64, 4
    $region17: #{tpu_custom_call.1} parent=1 // pred_fallthru
      _
    // Predicated region
    $region18: #{tpu_custom_call.1} parent=1 // pred_check
      _
    $region19: #{tpu_custom_call.1} parent=1 // pred_check_branch
      %62 = sbr.rel (0) target = $region21
    $region20: #{tpu_custom_call.1} parent=1 // pred_region
      %63 = dma.done [#allocation3], 128
    $region21: #{tpu_custom_call.1} parent=1 // pred_fallthru
      _
    // Predicated region
    $region22: #{tpu_custom_call.1} parent=1 // pred_check
      _
    $region23: #{tpu_custom_call.1} parent=1 // pred_check_branch
      %65 = sbr.rel (0) target = $region25
    $region24: #{tpu_custom_call.1} parent=1 // pred_region
      %66 = dma.done [#allocation6], 1024
    $region25: #{tpu_custom_call.1} parent=1 // pred_fallthru
      _
    // Predicated region
    $region26: #{tpu_custom_call.1} parent=1 // pred_check
      _
    $region27: #{tpu_custom_call.1} parent=1 // pred_check_branch
      %68 = sbr.rel (0) target = $region29
    $region28: #{tpu_custom_call.1} parent=1 // pred_region
      %69 = dma.done [#allocation6], 1024
    $region29: #{tpu_custom_call.1} parent=1 // pred_fallthru
      _
    // Predicated region
    $region30: #{tpu_custom_call.1} parent=1 // pred_check
      _
    $region31: #{tpu_custom_call.1} parent=1 // pred_check_branch
      %71 = sbr.rel (0) target = $region33
    $region32: #{tpu_custom_call.1} parent=1 // pred_region
      %72 = dma.done [#allocation9], 1024
    $region33: #{tpu_custom_call.1} parent=1 // pred_fallthru
      _
    %v74 = vld [vmem:[#allocation2] sm:$0xf]
    %v75 = vld [vmem:[#allocation2 + $0x4] sm:$0xf]
    %v76 = vld [vmem:[#allocation5] sm:$0xf]
    %v77 = vld [vmem:[#allocation5 + $0x4] sm:$0xf]
    %v78 = vld [vmem:[#allocation5 + $0x8] sm:$0xf]
    %v79 = vld [vmem:[#allocation5 + $0xc] sm:$0xf]
    %v80 = vld [vmem:[#allocation5 + $0x10] sm:$0xf]
    %v81 = vld [vmem:[#allocation5 + $0x14] sm:$0xf]
    %v82 = vld [vmem:[#allocation5 + $0x18] sm:$0xf]
    %v83 = vld [vmem:[#allocation5 + $0x1c] sm:$0xf]
    %v84 = vld [vmem:[#allocation5 + $0x20] sm:$0xf]
    %v85 = vld [vmem:[#allocation5 + $0x24] sm:$0xf]
    %v86 = vld [vmem:[#allocation5 + $0x28] sm:$0xf]
    %v87 = vld [vmem:[#allocation5 + $0x2c] sm:$0xf]
    %v88 = vld [vmem:[#allocation5 + $0x30] sm:$0xf]
    %v89 = vld [vmem:[#allocation5 + $0x34] sm:$0xf]
    %v90 = vld [vmem:[#allocation5 + $0x38] sm:$0xf]
    %v91 = vld [vmem:[#allocation5 + $0x3c] sm:$0xf]
    %v94 = vunpack.c.l.b16 %v74
    %v95 = vunpack.c.l.b16 %v75
    %v96 = vpack.c.b16 %v95, %v94
    %v114 = vunpack.c.l.b16 %v76
    %v115 = vunpack.c.l.b16 %v77
    %v116 = vunpack.c.l.b16 %v78
    %v117 = vunpack.c.l.b16 %v79
    %v118 = vunpack.c.l.b16 %v80
    %v119 = vunpack.c.l.b16 %v81
    %v120 = vunpack.c.l.b16 %v82
    %v121 = vunpack.c.l.b16 %v83
    %v122 = vunpack.c.l.b16 %v84
    %v123 = vunpack.c.l.b16 %v85
    %v124 = vunpack.c.l.b16 %v86
    %v125 = vunpack.c.l.b16 %v87
    %v126 = vunpack.c.l.b16 %v88
    %v127 = vunpack.c.l.b16 %v89
    %v128 = vunpack.c.l.b16 %v90
    %v129 = vunpack.c.l.b16 %v91
    %v130 = vpack.c.b16 %v115, %v114
    %v131 = vpack.c.b16 %v117, %v116
    %v132 = vpack.c.b16 %v119, %v118
    %v133 = vpack.c.b16 %v121, %v120
    %v134 = vpack.c.b16 %v123, %v122
    %v135 = vpack.c.b16 %v125, %v124
    %v136 = vpack.c.b16 %v127, %v126
    %v137 = vpack.c.b16 %v129, %v128
    %146 = vmatprep.subr.bf16.mxu0 0
    %147 = vmatpush1.bf16.msra.mxu0 %v130
    %148 = vmatprep.subr.bf16.mxu0 0
    %149 = vmatpush1.bf16.msra.mxu0 %v131
    %150 = vmatprep.subr.bf16.mxu0 0
    %151 = vmatpush1.bf16.msra.mxu0 %v132
    %152 = vmatprep.subr.bf16.mxu0 0
    %153 = vmatpush1.bf16.msra.mxu0 %v133
    %154 = vmatprep.subr.bf16.mxu0 0
    %155 = vmatpush1.bf16.msra.mxu0 %v134
    %156 = vmatprep.subr.bf16.mxu0 0
    %157 = vmatpush1.bf16.msra.mxu0 %v135
    %158 = vmatprep.subr.bf16.mxu0 0
    %159 = vmatpush1.bf16.msra.mxu0 %v136
    %160 = vmatprep.subr.bf16.mxu0 0
    %161 = vmatpush1.bf16.msra.mxu0 %v137
    %162 = vmatprep.subr.bf16.mxu0 0
    %163 = vmatpush1.bf16.msra.mxu0 0
    %164 = vmatprep.subr.bf16.mxu0 0
    %165 = vmatpush1.bf16.msra.mxu0 0
    %166 = vmatprep.subr.bf16.mxu0 0
    %167 = vmatpush1.bf16.msra.mxu0 0
    %168 = vmatprep.subr.bf16.mxu0 0
    %169 = vmatpush1.bf16.msra.mxu0 0
    %170 = vmatprep.subr.bf16.mxu0 0
    %171 = vmatpush1.bf16.msra.mxu0 0
    %172 = vmatprep.subr.bf16.mxu0 0
    %173 = vmatpush1.bf16.msra.mxu0 0
    %174 = vmatprep.subr.bf16.mxu0 0
    %175 = vmatpush1.bf16.msra.mxu0 0
    %176 = vmatprep.subr.bf16.mxu0 0
    %177 = vmatpush1.bf16.msra.mxu0 0
    %178 = vmatprep.mubr.bf16.mxu0 0
    %179 = vmatmul.mubr.bf16.gmra.mrb[0].mxu0 %v96
    %v180 = vpop.f32.mrb[0].mxu0
    %v181 = vadd.f32 0.0, %v180
    %v182 = vpop.f32.mrb[0].mxu0
    %v183 = vpop.f32.mrb[0].mxu0
    %v184 = vadd.f32 0.0, %v183
    %v185 = vpop.f32.mrb[0].mxu0
    %186 = vdwg.mxu0
    %v187 = vld [vmem:[#allocation7] sm:$0xf]
    %v188 = vld [vmem:[#allocation7 + $0x4] sm:$0xf]
    %v189 = vld [vmem:[#allocation7 + $0x8] sm:$0xf]
    %v190 = vld [vmem:[#allocation7 + $0xc] sm:$0xf]
    %v191 = vld [vmem:[#allocation7 + $0x10] sm:$0xf]
    %v192 = vld [vmem:[#allocation7 + $0x14] sm:$0xf]
    %v193 = vld [vmem:[#allocation7 + $0x18] sm:$0xf]
    %v194 = vld [vmem:[#allocation7 + $0x1c] sm:$0xf]
    %v195 = vld [vmem:[#allocation7 + $0x20] sm:$0xf]
    %v196 = vld [vmem:[#allocation7 + $0x24] sm:$0xf]
    %v197 = vld [vmem:[#allocation7 + $0x28] sm:$0xf]
    %v198 = vld [vmem:[#allocation7 + $0x2c] sm:$0xf]
    %v199 = vld [vmem:[#allocation7 + $0x30] sm:$0xf]
    %v200 = vld [vmem:[#allocation7 + $0x34] sm:$0xf]
    %v201 = vld [vmem:[#allocation7 + $0x38] sm:$0xf]
    %v202 = vld [vmem:[#allocation7 + $0x3c] sm:$0xf]
    %v219 = vunpack.c.l.b16 %v187
    %v220 = vunpack.c.l.b16 %v188
    %v221 = vunpack.c.l.b16 %v189
    %v222 = vunpack.c.l.b16 %v190
    %v223 = vunpack.c.l.b16 %v191
    %v224 = vunpack.c.l.b16 %v192
    %v225 = vunpack.c.l.b16 %v193
    %v226 = vunpack.c.l.b16 %v194
    %v227 = vunpack.c.l.b16 %v195
    %v228 = vunpack.c.l.b16 %v196
    %v229 = vunpack.c.l.b16 %v197
    %v230 = vunpack.c.l.b16 %v198
    %v231 = vunpack.c.l.b16 %v199
    %v232 = vunpack.c.l.b16 %v200
    %v233 = vunpack.c.l.b16 %v201
    %v234 = vunpack.c.l.b16 %v202
    %v235 = vpack.c.b16 %v220, %v219
    %v236 = vpack.c.b16 %v222, %v221
    %v237 = vpack.c.b16 %v224, %v223
    %v238 = vpack.c.b16 %v226, %v225
    %v239 = vpack.c.b16 %v228, %v227
    %v240 = vpack.c.b16 %v230, %v229
    %v241 = vpack.c.b16 %v232, %v231
    %v242 = vpack.c.b16 %v234, %v233
    %251 = vmatprep.subr.bf16.mxu0 0
    %252 = vmatpush1.bf16.msra.mxu0 %v235
    %253 = vmatprep.subr.bf16.mxu0 0
    %254 = vmatpush1.bf16.msra.mxu0 %v236
    %255 = vmatprep.subr.bf16.mxu0 0
    %256 = vmatpush1.bf16.msra.mxu0 %v237
    %257 = vmatprep.subr.bf16.mxu0 0
    %258 = vmatpush1.bf16.msra.mxu0 %v238
    %259 = vmatprep.subr.bf16.mxu0 0
    %260 = vmatpush1.bf16.msra.mxu0 %v239
    %261 = vmatprep.subr.bf16.mxu0 0
    %262 = vmatpush1.bf16.msra.mxu0 %v240
    %263 = vmatprep.subr.bf16.mxu0 0
    %264 = vmatpush1.bf16.msra.mxu0 %v241
    %265 = vmatprep.subr.bf16.mxu0 0
    %266 = vmatpush1.bf16.msra.mxu0 %v242
    %267 = vmatprep.subr.bf16.mxu0 0
    %268 = vmatpush1.bf16.msra.mxu0 0
    %269 = vmatprep.subr.bf16.mxu0 0
    %270 = vmatpush1.bf16.msra.mxu0 0
    %271 = vmatprep.subr.bf16.mxu0 0
    %272 = vmatpush1.bf16.msra.mxu0 0
    %273 = vmatprep.subr.bf16.mxu0 0
    %274 = vmatpush1.bf16.msra.mxu0 0
    %275 = vmatprep.subr.bf16.mxu0 0
    %276 = vmatpush1.bf16.msra.mxu0 0
    %277 = vmatprep.subr.bf16.mxu0 0
    %278 = vmatpush1.bf16.msra.mxu0 0
    %279 = vmatprep.subr.bf16.mxu0 0
    %280 = vmatpush1.bf16.msra.mxu0 0
    %281 = vmatprep.subr.bf16.mxu0 0
    %282 = vmatpush1.bf16.msra.mxu0 0
    %283 = vmatprep.mubr.bf16.mxu0 0
    %284 = vmatmul.mubr.bf16.gmra.mrb[0].mxu0 %v96
    %v285 = vpop.f32.mrb[0].mxu0
    %v286 = vadd.f32 0.0, %v285
    %v287 = vpop.f32.mrb[0].mxu0
    %v288 = vpop.f32.mrb[0].mxu0
    %v289 = vadd.f32 0.0, %v288
    %v290 = vpop.f32.mrb[0].mxu0
    %291 = vdwg.mxu0
    %v292 = vmul.f32 %v181, %v181
    %v293 = vmul.f32 %v184, %v184
    %v294 = vmul.f32 %v286, %v286
    %v295 = vmul.f32 %v289, %v289
    %v296 = vadd.f32 %v292, %v294
    %v297 = vadd.f32 %v293, %v295
    %v298 = vpack.c.bf16 %v297, %v296
    %v299 = vld [vmem:[#allocation8] sm:$0xf]
    %v300 = vld [vmem:[#allocation8 + $0x4] sm:$0xf]
    %v301 = vld [vmem:[#allocation8 + $0x8] sm:$0xf]
    %v302 = vld [vmem:[#allocation8 + $0xc] sm:$0xf]
    %v303 = vld [vmem:[#allocation8 + $0x10] sm:$0xf]
    %v304 = vld [vmem:[#allocation8 + $0x14] sm:$0xf]
    %v305 = vld [vmem:[#allocation8 + $0x18] sm:$0xf]
    %v306 = vld [vmem:[#allocation8 + $0x1c] sm:$0xf]
    %v307 = vld [vmem:[#allocation8 + $0x20] sm:$0xf]
    %v308 = vld [vmem:[#allocation8 + $0x24] sm:$0xf]
    %v309 = vld [vmem:[#allocation8 + $0x28] sm:$0xf]
    %v310 = vld [vmem:[#allocation8 + $0x2c] sm:$0xf]
    %v311 = vld [vmem:[#allocation8 + $0x30] sm:$0xf]
    %v312 = vld [vmem:[#allocation8 + $0x34] sm:$0xf]
    %v313 = vld [vmem:[#allocation8 + $0x38] sm:$0xf]
    %v314 = vld [vmem:[#allocation8 + $0x3c] sm:$0xf]
    %v331 = vunpack.c.l.b16 %v299
    %v332 = vunpack.c.l.b16 %v300
    %v333 = vunpack.c.l.b16 %v301
    %v334 = vunpack.c.l.b16 %v302
    %v335 = vunpack.c.l.b16 %v303
    %v336 = vunpack.c.l.b16 %v304
    %v337 = vunpack.c.l.b16 %v305
    %v338 = vunpack.c.l.b16 %v306
    %v339 = vunpack.c.l.b16 %v307
    %v340 = vunpack.c.l.b16 %v308
    %v341 = vunpack.c.l.b16 %v309
    %v342 = vunpack.c.l.b16 %v310
    %v343 = vunpack.c.l.b16 %v311
    %v344 = vunpack.c.l.b16 %v312
    %v345 = vunpack.c.l.b16 %v313
    %v346 = vunpack.c.l.b16 %v314
    %v347 = vpack.c.b16 %v332, %v331
    %v348 = vpack.c.b16 %v334, %v333
    %v349 = vpack.c.b16 %v336, %v335
    %v350 = vpack.c.b16 %v338, %v337
    %v351 = vpack.c.b16 %v340, %v339
    %v352 = vpack.c.b16 %v342, %v341
    %v353 = vpack.c.b16 %v344, %v343
    %v354 = vpack.c.b16 %v346, %v345
    %363 = vmatprep.subr.bf16.mxu0 0
    %364 = vmatpush1.bf16.msra.mxu0 %v347
    %365 = vmatprep.subr.bf16.mxu0 0
    %366 = vmatpush1.bf16.msra.mxu0 %v348
    %367 = vmatprep.subr.bf16.mxu0 0
    %368 = vmatpush1.bf16.msra.mxu0 %v349
    %369 = vmatprep.subr.bf16.mxu0 0
    %370 = vmatpush1.bf16.msra.mxu0 %v350
    %371 = vmatprep.subr.bf16.mxu0 0
    %372 = vmatpush1.bf16.msra.mxu0 %v351
    %373 = vmatprep.subr.bf16.mxu0 0
    %374 = vmatpush1.bf16.msra.mxu0 %v352
    %375 = vmatprep.subr.bf16.mxu0 0
    %376 = vmatpush1.bf16.msra.mxu0 %v353
    %377 = vmatprep.subr.bf16.mxu0 0
    %378 = vmatpush1.bf16.msra.mxu0 %v354
    %379 = vmatprep.subr.bf16.mxu0 0
    %380 = vmatpush1.bf16.msra.mxu0 0
    %381 = vmatprep.subr.bf16.mxu0 0
    %382 = vmatpush1.bf16.msra.mxu0 0
    %383 = vmatprep.subr.bf16.mxu0 0
    %384 = vmatpush1.bf16.msra.mxu0 0
    %385 = vmatprep.subr.bf16.mxu0 0
    %386 = vmatpush1.bf16.msra.mxu0 0
    %387 = vmatprep.subr.bf16.mxu0 0
    %388 = vmatpush1.bf16.msra.mxu0 0
    %389 = vmatprep.subr.bf16.mxu0 0
    %390 = vmatpush1.bf16.msra.mxu0 0
    %391 = vmatprep.subr.bf16.mxu0 0
    %392 = vmatpush1.bf16.msra.mxu0 0
    %393 = vmatprep.subr.bf16.mxu0 0
    %394 = vmatpush1.bf16.msra.mxu0 0
    %395 = vmatprep.mubr.bf16.mxu0 0
    %396 = vmatmul.mubr.bf16.gmra.mrb[0].mxu0 %v298
    %v397 = vpop.f32.mrb[0].mxu0
    %v398 = vadd.f32 0.0, %v397
    %v399 = vpop.f32.mrb[0].mxu0
    %v400 = vpop.f32.mrb[0].mxu0
    %v401 = vadd.f32 0.0, %v400
    %v402 = vpop.f32.mrb[0].mxu0
    %403 = vdwg.mxu0
    %v404 = vmax.f32 %v398, 1e-05
    %v405 = vmax.f32 %v401, 1e-05
    %v406 = vlog2.pop %v404
    %v407 = vmul.f32 %v406, 0.6931472
    %v408 = vlog2.pop %v405
    %v409 = vmul.f32 %v408, 0.6931472
    %v410 = vmul.f32 %v407, 0.4342945
    %v411 = vmul.f32 %v409, 0.4342945
    %412 = vst [vmem:[#allocation10] sm:$0xff] %v410
    %413 = vst [vmem:[#allocation10 + $0x8] sm:$0xff] %v411
    // Predicated region
    $region34: #{tpu_custom_call.1} parent=1 // pred_check
      _
    $region35: #{tpu_custom_call.1} parent=1 // pred_check_branch
      %415 = sbr.rel (0) target = $region37
    $region36: #{tpu_custom_call.1} parent=1 // pred_region
      %s417 = ssub.s32 256, 256
      %418 = vsyncadd [#allocation4], %s417
      %s419 = sshll.u32 [#allocation10], 4
      %s420 = int_to_ptr.vmem [resolvable:$true] %s419
      %425 = dma.vmem_to_hbm [thread:$0]  %s420, 256, %s4, [#allocation4], 128, 128, 8
    $region37: #{tpu_custom_call.1} parent=1 // pred_fallthru
      _
    // Predicated region
    $region38: #{tpu_custom_call.1} parent=1 // pred_check
      _
    $region39: #{tpu_custom_call.1} parent=1 // pred_check_branch
      %427 = sbr.rel (0) target = $region41
    $region40: #{tpu_custom_call.1} parent=1 // pred_region
      %428 = dma.done [#allocation4], 256
    $region41: #{tpu_custom_call.1} parent=1 // pred_fallthru
      _
    %429 = vsyncpa [#allocation3], 1
    %430 = vsyncpa [#allocation6], 1
    %431 = vsyncpa [#allocation9], 1
    %432 = vsyncpa [#allocation4], 1

// kernel: tpu_custom_call.1
$region0: #{tpu_custom_call.1}
  #allocation0 [shape = 'u32[]', space=smem, size = 0x4, offset = 0x4, fixed_abs, tag = 'smem constant byte address 0x4 - core index']
  #allocation1 [shape = 'u32[144,128]{1,0:T(1,128)}', space=vmem, size = 0x12000, scoped, tag = 'internal scratch']
  %s0 = inlined_call_operand.hbm [shape: bf16[16,128], index: 0, kind: input, shape index: {}]
  %s1 = inlined_call_operand.hbm [shape: bf16[128,128], index: 1, kind: input, shape index: {}]
  %s2 = inlined_call_operand.hbm [shape: bf16[128,128], index: 2, kind: input, shape index: {}]
  %s3 = inlined_call_operand.hbm [shape: bf16[128,128], index: 3, kind: input, shape index: {}]
  %s4 = inlined_call_operand.hbm [shape: f32[16,128], index: 4, kind: output, shape index: {}]
  %s5 = sld [smem:[#allocation0]]
  $region42: #{tpu_custom_call.1} parent=0
    _
  %s7 = ssub.s32 1, %s5
  %s8 = scalar_select 0, %s7, %s5
  $region1: #{tpu_custom_call.1} parent=0
    #allocation2 [shape = 'u8[4096]{0}', space=vmem, size = 0x1000, scoped, tag = 'input window, operand 0, single buffered']
    #allocation3 [shape = 's32[1]{0}', space=sflag, size = 0x4, scoped, tag = 'scoped memory for tpu_custom_call.1']
    #allocation4 [shape = 's32[1]{0}', space=sflag, size = 0x4, scoped, tag = 'scoped memory for tpu_custom_call.1']
    #allocation5 [shape = 'u8[32768]{0}', space=vmem, size = 0x8000, scoped, tag = 'input window, operand 1, single buffered']
    #allocation6 [shape = 's32[1]{0}', space=sflag, size = 0x4, scoped, tag = 'scoped memory for tpu_custom_call.1']
    #allocation7 [shape = 'u8[32768]{0}', space=vmem, size = 0x8000, scoped, tag = 'input window, operand 2, single buffered']
    #allocation8 [shape = 'u8[32768]{0}', space=vmem, size = 0x8000, scoped, tag = 'input window, operand 3, single buffered']
    #allocation9 [shape = 's32[1]{0}', space=sflag, size = 0x4, scoped, tag = 'scoped memory for tpu_custom_call.1']
    #allocation10 [shape = 'u8[8192]{0}', space=vmem, size = 0x2000, scoped, tag = 'output window, operand 0, single buffered']
    %9 = vsyncpa [#allocation3], 0
    %10 = vsyncpa [#allocation6], 0
    %11 = vsyncpa [#allocation9], 0
    %12 = vsyncpa [#allocation4], 0
    // Predicated region
    $region2: #{tpu_custom_call.1} parent=1 // pred_check
      _
    $region3: #{tpu_custom_call.1} parent=1 // pred_check_branch
      %14 = sbr.rel (0) target = $region5
    $region4: #{tpu_custom_call.1} parent=1 // pred_region
      %s16 = ssub.s32 128, 128
      %17 = vsyncadd [#allocation3], %s16
      %s18 = sshll.u32 [#allocation2], 4
      %s19 = int_to_ptr.vmem [resolvable:$true] %s18
      %24 = dma.hbm_to_vmem [thread:$0]  %s0, 128, %s19, [#allocation3], 64, 64, 4
    $region5: #{tpu_custom_call.1} parent=1 // pred_fallthru
      _
    // Predicated region
    $region6: #{tpu_custom_call.1} parent=1 // pred_check
      _
    $region7: #{tpu_custom_call.1} parent=1 // pred_check_branch
      %26 = sbr.rel (0) target = $region9
    $region8: #{tpu_custom_call.1} parent=1 // pred_region
      %s28 = ssub.s32 1024, 1024
      %29 = vsyncadd [#allocation6], %s28
      %s30 = sshll.u32 [#allocation5], 4
      %s31 = int_to_ptr.vmem [resolvable:$true] %s30
      %36 = dma.hbm_to_vmem [thread:$0]  %s1, 1024, %s31, [#allocation6], 64, 64, 4
    $region9: #{tpu_custom_call.1} parent=1 // pred_fallthru
      _
    // Predicated region
    $region10: #{tpu_custom_call.1} parent=1 // pred_check
      _
    $region11: #{tpu_custom_call.1} parent=1 // pred_check_branch
      %38 = sbr.rel (0) target = $region13
    $region12: #{tpu_custom_call.1} parent=1 // pred_region
      %s40 = ssub.s32 1024, 1024
      %41 = vsyncadd [#allocation6], %s40
      %s42 = sshll.u32 [#allocation7], 4
      %s43 = int_to_ptr.vmem [resolvable:$true] %s42
      %48 = dma.hbm_to_vmem [thread:$0]  %s2, 1024, %s43, [#allocation6], 64, 64, 4
    $region13: #{tpu_custom_call.1} parent=1 // pred_fallthru
      _
    // Predicated region
    $region14: #{tpu_custom_call.1} parent=1 // pred_check
      _
    $region15: #{tpu_custom_call.1} parent=1 // pred_check_branch
      %50 = sbr.rel (0) target = $region17
    $region16: #{tpu_custom_call.1} parent=1 // pred_region
      %s52 = ssub.s32 1024, 1024
      %53 = vsyncadd [#allocation9], %s52
      %s54 = sshll.u32 [#allocation8], 4
      %s55 = int_to_ptr.vmem [resolvable:$true] %s54
      %60 = dma.hbm_to_vmem [thread:$0]  %s3, 1024, %s55, [#allocation9], 64, 64, 4
    $region17: #{tpu_custom_call.1} parent=1 // pred_fallthru
      _
    // Predicated region
    $region18: #{tpu_custom_call.1} parent=1 // pred_check
      _
    $region19: #{tpu_custom_call.1} parent=1 // pred_check_branch
      %62 = sbr.rel (0) target = $region21
    $region20: #{tpu_custom_call.1} parent=1 // pred_region
      %63 = dma.done [#allocation3], 128
    $region21: #{tpu_custom_call.1} parent=1 // pred_fallthru
      _
    // Predicated region
    $region22: #{tpu_custom_call.1} parent=1 // pred_check
      _
    $region23: #{tpu_custom_call.1} parent=1 // pred_check_branch
      %65 = sbr.rel (0) target = $region25
    $region24: #{tpu_custom_call.1} parent=1 // pred_region
      %66 = dma.done [#allocation6], 1024
    $region25: #{tpu_custom_call.1} parent=1 // pred_fallthru
      _
    // Predicated region
    $region26: #{tpu_custom_call.1} parent=1 // pred_check
      _
    $region27: #{tpu_custom_call.1} parent=1 // pred_check_branch
      %68 = sbr.rel (0) target = $region29
    $region28: #{tpu_custom_call.1} parent=1 // pred_region
      %69 = dma.done [#allocation6], 1024
    $region29: #{tpu_custom_call.1} parent=1 // pred_fallthru
      _
    // Predicated region
    $region30: #{tpu_custom_call.1} parent=1 // pred_check
      _
    $region31: #{tpu_custom_call.1} parent=1 // pred_check_branch
      %71 = sbr.rel (0) target = $region33
    $region32: #{tpu_custom_call.1} parent=1 // pred_region
      %72 = dma.done [#allocation9], 1024
    $region33: #{tpu_custom_call.1} parent=1 // pred_fallthru
      _
    %v74 = vld [vmem:[#allocation2] sm:$0xf]
    %v75 = vld [vmem:[#allocation2 + $0x4] sm:$0xf]
    %v76 = vld [vmem:[#allocation5] sm:$0xf]
    %v77 = vld [vmem:[#allocation5 + $0x4] sm:$0xf]
    %v78 = vld [vmem:[#allocation5 + $0x8] sm:$0xf]
    %v79 = vld [vmem:[#allocation5 + $0xc] sm:$0xf]
    %v80 = vld [vmem:[#allocation5 + $0x10] sm:$0xf]
    %v81 = vld [vmem:[#allocation5 + $0x14] sm:$0xf]
    %v82 = vld [vmem:[#allocation5 + $0x18] sm:$0xf]
    %v83 = vld [vmem:[#allocation5 + $0x1c] sm:$0xf]
    %v84 = vld [vmem:[#allocation5 + $0x20] sm:$0xf]
    %v85 = vld [vmem:[#allocation5 + $0x24] sm:$0xf]
    %v86 = vld [vmem:[#allocation5 + $0x28] sm:$0xf]
    %v87 = vld [vmem:[#allocation5 + $0x2c] sm:$0xf]
    %v88 = vld [vmem:[#allocation5 + $0x30] sm:$0xf]
    %v89 = vld [vmem:[#allocation5 + $0x34] sm:$0xf]
    %v90 = vld [vmem:[#allocation5 + $0x38] sm:$0xf]
    %v91 = vld [vmem:[#allocation5 + $0x3c] sm:$0xf]
    %v94 = vunpack.c.l.b16 %v74
    %v95 = vunpack.c.l.b16 %v75
    %v96 = vpack.c.b16 %v95, %v94
    %v114 = vunpack.c.l.b16 %v76
    %v115 = vunpack.c.l.b16 %v77
    %v116 = vunpack.c.l.b16 %v78
    %v117 = vunpack.c.l.b16 %v79
    %v118 = vunpack.c.l.b16 %v80
    %v119 = vunpack.c.l.b16 %v81
    %v120 = vunpack.c.l.b16 %v82
    %v121 = vunpack.c.l.b16 %v83
    %v122 = vunpack.c.l.b16 %v84
    %v123 = vunpack.c.l.b16 %v85
    %v124 = vunpack.c.l.b16 %v86
    %v125 = vunpack.c.l.b16 %v87
    %v126 = vunpack.c.l.b16 %v88
    %v127 = vunpack.c.l.b16 %v89
    %v128 = vunpack.c.l.b16 %v90
    %v129 = vunpack.c.l.b16 %v91
    %v130 = vpack.c.b16 %v115, %v114
    %v131 = vpack.c.b16 %v117, %v116
    %v132 = vpack.c.b16 %v119, %v118
    %v133 = vpack.c.b16 %v121, %v120
    %v134 = vpack.c.b16 %v123, %v122
    %v135 = vpack.c.b16 %v125, %v124
    %v136 = vpack.c.b16 %v127, %v126
    %v137 = vpack.c.b16 %v129, %v128
    %146 = vmatprep.subr.bf16.mxu0 0
    %147 = vmatpush1.bf16.msra.mxu0 %v130
    %148 = vmatprep.subr.bf16.mxu0 0
    %149 = vmatpush1.bf16.msra.mxu0 %v131
    %150 = vmatprep.subr.bf16.mxu0 0
    %151 = vmatpush1.bf16.msra.mxu0 %v132
    %152 = vmatprep.subr.bf16.mxu0 0
    %153 = vmatpush1.bf16.msra.mxu0 %v133
    %154 = vmatprep.subr.bf16.mxu0 0
    %155 = vmatpush1.bf16.msra.mxu0 %v134
    %156 = vmatprep.subr.bf16.mxu0 0
    %157 = vmatpush1.bf16.msra.mxu0 %v135
    %158 = vmatprep.subr.bf16.mxu0 0
    %159 = vmatpush1.bf16.msra.mxu0 %v136
    %160 = vmatprep.subr.bf16.mxu0 0
    %161 = vmatpush1.bf16.msra.mxu0 %v137
    %162 = vmatprep.subr.bf16.mxu0 0
    %163 = vmatpush1.bf16.msra.mxu0 0
    %164 = vmatprep.subr.bf16.mxu0 0
    %165 = vmatpush1.bf16.msra.mxu0 0
    %166 = vmatprep.subr.bf16.mxu0 0
    %167 = vmatpush1.bf16.msra.mxu0 0
    %168 = vmatprep.subr.bf16.mxu0 0
    %169 = vmatpush1.bf16.msra.mxu0 0
    %170 = vmatprep.subr.bf16.mxu0 0
    %171 = vmatpush1.bf16.msra.mxu0 0
    %172 = vmatprep.subr.bf16.mxu0 0
    %173 = vmatpush1.bf16.msra.mxu0 0
    %174 = vmatprep.subr.bf16.mxu0 0
    %175 = vmatpush1.bf16.msra.mxu0 0
    %176 = vmatprep.subr.bf16.mxu0 0
    %177 = vmatpush1.bf16.msra.mxu0 0
    %178 = vmatprep.mubr.bf16.mxu0 0
    %179 = vmatmul.mubr.bf16.gmra.mrb[0].mxu0 %v96
    %v180 = vpop.f32.mrb[0].mxu0
    %v181 = vadd.f32 0.0, %v180
    %v182 = vpop.f32.mrb[0].mxu0
    %v183 = vpop.f32.mrb[0].mxu0
    %v184 = vadd.f32 0.0, %v183
    %v185 = vpop.f32.mrb[0].mxu0
    %186 = vdwg.mxu0
    %v187 = vld [vmem:[#allocation7] sm:$0xf]
    %v188 = vld [vmem:[#allocation7 + $0x4] sm:$0xf]
    %v189 = vld [vmem:[#allocation7 + $0x8] sm:$0xf]
    %v190 = vld [vmem:[#allocation7 + $0xc] sm:$0xf]
    %v191 = vld [vmem:[#allocation7 + $0x10] sm:$0xf]
    %v192 = vld [vmem:[#allocation7 + $0x14] sm:$0xf]
    %v193 = vld [vmem:[#allocation7 + $0x18] sm:$0xf]
    %v194 = vld [vmem:[#allocation7 + $0x1c] sm:$0xf]
    %v195 = vld [vmem:[#allocation7 + $0x20] sm:$0xf]
    %v196 = vld [vmem:[#allocation7 + $0x24] sm:$0xf]
    %v197 = vld [vmem:[#allocation7 + $0x28] sm:$0xf]
    %v198 = vld [vmem:[#allocation7 + $0x2c] sm:$0xf]
    %v199 = vld [vmem:[#allocation7 + $0x30] sm:$0xf]
    %v200 = vld [vmem:[#allocation7 + $0x34] sm:$0xf]
    %v201 = vld [vmem:[#allocation7 + $0x38] sm:$0xf]
    %v202 = vld [vmem:[#allocation7 + $0x3c] sm:$0xf]
    %v219 = vunpack.c.l.b16 %v187
    %v220 = vunpack.c.l.b16 %v188
    %v221 = vunpack.c.l.b16 %v189
    %v222 = vunpack.c.l.b16 %v190
    %v223 = vunpack.c.l.b16 %v191
    %v224 = vunpack.c.l.b16 %v192
    %v225 = vunpack.c.l.b16 %v193
    %v226 = vunpack.c.l.b16 %v194
    %v227 = vunpack.c.l.b16 %v195
    %v228 = vunpack.c.l.b16 %v196
    %v229 = vunpack.c.l.b16 %v197
    %v230 = vunpack.c.l.b16 %v198
    %v231 = vunpack.c.l.b16 %v199
    %v232 = vunpack.c.l.b16 %v200
    %v233 = vunpack.c.l.b16 %v201
    %v234 = vunpack.c.l.b16 %v202
    %v235 = vpack.c.b16 %v220, %v219
    %v236 = vpack.c.b16 %v222, %v221
    %v237 = vpack.c.b16 %v224, %v223
    %v238 = vpack.c.b16 %v226, %v225
    %v239 = vpack.c.b16 %v228, %v227
    %v240 = vpack.c.b16 %v230, %v229
    %v241 = vpack.c.b16 %v232, %v231
    %v242 = vpack.c.b16 %v234, %v233
    %251 = vmatprep.subr.bf16.mxu0 0
    %252 = vmatpush1.bf16.msra.mxu0 %v235
    %253 = vmatprep.subr.bf16.mxu0 0
    %254 = vmatpush1.bf16.msra.mxu0 %v236
    %255 = vmatprep.subr.bf16.mxu0 0
    %256 = vmatpush1.bf16.msra.mxu0 %v237
    %257 = vmatprep.subr.bf16.mxu0 0
    %258 = vmatpush1.bf16.msra.mxu0 %v238
    %259 = vmatprep.subr.bf16.mxu0 0
    %260 = vmatpush1.bf16.msra.mxu0 %v239
    %261 = vmatprep.subr.bf16.mxu0 0
    %262 = vmatpush1.bf16.msra.mxu0 %v240
    %263 = vmatprep.subr.bf16.mxu0 0
    %264 = vmatpush1.bf16.msra.mxu0 %v241
    %265 = vmatprep.subr.bf16.mxu0 0
    %266 = vmatpush1.bf16.msra.mxu0 %v242
    %267 = vmatprep.subr.bf16.mxu0 0
    %268 = vmatpush1.bf16.msra.mxu0 0
    %269 = vmatprep.subr.bf16.mxu0 0
    %270 = vmatpush1.bf16.msra.mxu0 0
    %271 = vmatprep.subr.bf16.mxu0 0
    %272 = vmatpush1.bf16.msra.mxu0 0
    %273 = vmatprep.subr.bf16.mxu0 0
    %274 = vmatpush1.bf16.msra.mxu0 0
    %275 = vmatprep.subr.bf16.mxu0 0
    %276 = vmatpush1.bf16.msra.mxu0 0
    %277 = vmatprep.subr.bf16.mxu0 0
    %278 = vmatpush1.bf16.msra.mxu0 0
    %279 = vmatprep.subr.bf16.mxu0 0
    %280 = vmatpush1.bf16.msra.mxu0 0
    %281 = vmatprep.subr.bf16.mxu0 0
    %282 = vmatpush1.bf16.msra.mxu0 0
    %283 = vmatprep.mubr.bf16.mxu0 0
    %284 = vmatmul.mubr.bf16.gmra.mrb[0].mxu0 %v96
    %v285 = vpop.f32.mrb[0].mxu0
    %v286 = vadd.f32 0.0, %v285
    %v287 = vpop.f32.mrb[0].mxu0
    %v288 = vpop.f32.mrb[0].mxu0
    %v289 = vadd.f32 0.0, %v288
    %v290 = vpop.f32.mrb[0].mxu0
    %291 = vdwg.mxu0
    %v292 = vmul.f32 %v181, %v181
    %v293 = vmul.f32 %v184, %v184
    %v294 = vmul.f32 %v286, %v286
    %v295 = vmul.f32 %v289, %v289
    %v296 = vadd.f32 %v292, %v294
    %v297 = vadd.f32 %v293, %v295
    %v298 = vpack.c.bf16 %v297, %v296
    %v299 = vld [vmem:[#allocation8] sm:$0xf]
    %v300 = vld [vmem:[#allocation8 + $0x4] sm:$0xf]
    %v301 = vld [vmem:[#allocation8 + $0x8] sm:$0xf]
    %v302 = vld [vmem:[#allocation8 + $0xc] sm:$0xf]
    %v303 = vld [vmem:[#allocation8 + $0x10] sm:$0xf]
    %v304 = vld [vmem:[#allocation8 + $0x14] sm:$0xf]
    %v305 = vld [vmem:[#allocation8 + $0x18] sm:$0xf]
    %v306 = vld [vmem:[#allocation8 + $0x1c] sm:$0xf]
    %v307 = vld [vmem:[#allocation8 + $0x20] sm:$0xf]
    %v308 = vld [vmem:[#allocation8 + $0x24] sm:$0xf]
    %v309 = vld [vmem:[#allocation8 + $0x28] sm:$0xf]
    %v310 = vld [vmem:[#allocation8 + $0x2c] sm:$0xf]
    %v311 = vld [vmem:[#allocation8 + $0x30] sm:$0xf]
    %v312 = vld [vmem:[#allocation8 + $0x34] sm:$0xf]
    %v313 = vld [vmem:[#allocation8 + $0x38] sm:$0xf]
    %v314 = vld [vmem:[#allocation8 + $0x3c] sm:$0xf]
    %v331 = vunpack.c.l.b16 %v299
    %v332 = vunpack.c.l.b16 %v300
    %v333 = vunpack.c.l.b16 %v301
    %v334 = vunpack.c.l.b16 %v302
    %v335 = vunpack.c.l.b16 %v303
    %v336 = vunpack.c.l.b16 %v304
    %v337 = vunpack.c.l.b16 %v305
    %v338 = vunpack.c.l.b16 %v306
    %v339 = vunpack.c.l.b16 %v307
    %v340 = vunpack.c.l.b16 %v308
    %v341 = vunpack.c.l.b16 %v309
    %v342 = vunpack.c.l.b16 %v310
    %v343 = vunpack.c.l.b16 %v311
    %v344 = vunpack.c.l.b16 %v312
    %v345 = vunpack.c.l.b16 %v313
    %v346 = vunpack.c.l.b16 %v314
    %v347 = vpack.c.b16 %v332, %v331
    %v348 = vpack.c.b16 %v334, %v333
    %v349 = vpack.c.b16 %v336, %v335
    %v350 = vpack.c.b16 %v338, %v337
    %v351 = vpack.c.b16 %v340, %v339
    %v352 = vpack.c.b16 %v342, %v341
    %v353 = vpack.c.b16 %v344, %v343
    %v354 = vpack.c.b16 %v346, %v345
    %363 = vmatprep.subr.bf16.mxu0 0
    %364 = vmatpush1.bf16.msra.mxu0 %v347
    %365 = vmatprep.subr.bf16.mxu0 0
    %366 = vmatpush1.bf16.msra.mxu0 %v348
    %367 = vmatprep.subr.bf16.mxu0 0
    %368 = vmatpush1.bf16.msra.mxu0 %v349
    %369 = vmatprep.subr.bf16.mxu0 0
    %370 = vmatpush1.bf16.msra.mxu0 %v350
    %371 = vmatprep.subr.bf16.mxu0 0
    %372 = vmatpush1.bf16.msra.mxu0 %v351
    %373 = vmatprep.subr.bf16.mxu0 0
    %374 = vmatpush1.bf16.msra.mxu0 %v352
    %375 = vmatprep.subr.bf16.mxu0 0
    %376 = vmatpush1.bf16.msra.mxu0 %v353
    %377 = vmatprep.subr.bf16.mxu0 0
    %378 = vmatpush1.bf16.msra.mxu0 %v354
    %379 = vmatprep.subr.bf16.mxu0 0
    %380 = vmatpush1.bf16.msra.mxu0 0
    %381 = vmatprep.subr.bf16.mxu0 0
    %382 = vmatpush1.bf16.msra.mxu0 0
    %383 = vmatprep.subr.bf16.mxu0 0
    %384 = vmatpush1.bf16.msra.mxu0 0
    %385 = vmatprep.subr.bf16.mxu0 0
    %386 = vmatpush1.bf16.msra.mxu0 0
    %387 = vmatprep.subr.bf16.mxu0 0
    %388 = vmatpush1.bf16.msra.mxu0 0
    %389 = vmatprep.subr.bf16.mxu0 0
    %390 = vmatpush1.bf16.msra.mxu0 0
    %391 = vmatprep.subr.bf16.mxu0 0
    %392 = vmatpush1.bf16.msra.mxu0 0
    %393 = vmatprep.subr.bf16.mxu0 0
    %394 = vmatpush1.bf16.msra.mxu0 0
    %395 = vmatprep.mubr.bf16.mxu0 0
    %396 = vmatmul.mubr.bf16.gmra.mrb[0].mxu0 %v298
    %v397 = vpop.f32.mrb[0].mxu0
    %v398 = vadd.f32 0.0, %v397
    %v399 = vpop.f32.mrb[0].mxu0
    %v400 = vpop.f32.mrb[0].mxu0
    %v401 = vadd.f32 0.0, %v400
    %v402 = vpop.f32.mrb[0].mxu0
    %403 = vdwg.mxu0
    %v404 = vmax.f32 %v398, 1e-05
    %v405 = vmax.f32 %v401, 1e-05
    %v406 = vlog2.pop %v404
    %v407 = vmul.f32 %v406, 0.6931472
    %v408 = vlog2.pop %v405
    %v409 = vmul.f32 %v408, 0.6931472
    %v410 = vmul.f32 %v407, 0.4342945
    %v411 = vmul.f32 %v409, 0.4342945
    %412 = vst [vmem:[#allocation10] sm:$0xff] %v410
    %413 = vst [vmem:[#allocation10 + $0x8] sm:$0xff] %v411
    // Predicated region
    $region34: #{tpu_custom_call.1} parent=1 // pred_check
      _
    $region35: #{tpu_custom_call.1} parent=1 // pred_check_branch
      %415 = sbr.rel (0) target = $region37
    $region36: #{tpu_custom_call.1} parent=1 // pred_region
      %s417 = ssub.s32 256, 256
      %418 = vsyncadd [#allocation4], %s417
      %s419 = sshll.u32 [#allocation10], 4
      %s420 = int_to_ptr.vmem [resolvable:$true] %s419
      %425 = dma.vmem_to_hbm [thread:$0]  %s420, 256, %s4, [#allocation4], 128, 128, 8
    $region37: #{tpu_custom_call.1} parent=1 // pred_fallthru
      _
    // Predicated region
    $region38: #{tpu_custom_call.1} parent=1 // pred_check
      _
    $region39: #{tpu_custom_call.1} parent=1 // pred_check_branch
      %427 = sbr.rel (0) target = $region41
    $region40: #{tpu_custom_call.1} parent=1 // pred_region
      %428 = dma.done [#allocation4], 256
    $region41: #{tpu_custom_call.1} parent=1 // pred_fallthru
      _
    %429 = vsyncpa [#allocation3], 1
    %430 = vsyncpa [#allocation6], 1
    %431 = vsyncpa [#allocation9], 1
    %432 = vsyncpa [#allocation4], 1

</llo_original>
